<compile_context>
chip_gen: v5e
topology: v5e:2x2
jax: 0.10.0
libtpu: 0.0.40
codegen_flags: <defaults>
</compile_context>

<pallas_src>
import jax
import jax.numpy as jnp
from jax.experimental import pallas as pl
from jax.experimental.pallas import tpu as pltpu


def sa_attn_kernel(x_ref, wproj_ref, bv_ref, wt_ref, bt_ref,
                   t_ref, sum_ref, ssq_ref):
    """Per-batch attention + trans_conv + fused BN partial stats.

    x_ref:     (1, C, N) block (compute dtype)
    wproj_ref: (C + C//4, C)  == concat([W_v, W_qk]) (compute dtype)
    bv_ref:    (C, 1) f32
    wt_ref:    (C, C) (compute dtype)
    bt_ref:    (C, 1) f32
    t_ref:     (1, C, N) f32 out (pre-BN activations)
    sum_ref:   (1, C, 1) f32 out (per-channel sum over N)
    ssq_ref:   (1, C, 1) f32 out (per-channel sum of squares over N)
    """
    C = x_ref.shape[1]
    cdt = x_ref.dtype

    x = x_ref[0]                                                     # (C, N)

    # Stacked channel projections: one MXU pass for v_conv and the tied q/k conv.
    proj = jnp.dot(wproj_ref[...], x, preferred_element_type=jnp.float32)
    xv = proj[:C] + bv_ref[...]                                      # (C, N) f32
    xk = proj[C:]                                                    # (C//4, N) f32

    # energy[i, j] = sum_c xk[c, i] * xk[c, j]  (== q_conv(x)^T @ k_conv(x))
    energy = jax.lax.dot_general(
        xk.astype(cdt), xk.astype(cdt),
        dimension_numbers=(((0,), (0,)), ((), ())),
        preferred_element_type=jnp.float32)                          # (N, N)

    # Row softmax (f32), then the offset-attention column re-normalization
    # (torch: attention / (1e-9 + attention.sum(dim=1, keepdims=True))).
    e = jnp.exp(energy - jnp.max(energy, axis=-1, keepdims=True))
    attn = e * pl.reciprocal(jnp.sum(e, axis=-1, keepdims=True))
    attn = attn * pl.reciprocal(1e-9 + jnp.sum(attn, axis=0, keepdims=True))

    xr = jnp.dot(xv.astype(cdt), attn.astype(cdt),
                 preferred_element_type=jnp.float32)                 # (C, N)

    t = jnp.dot(wt_ref[...],
                (x.astype(jnp.float32) - xr).astype(cdt),
                preferred_element_type=jnp.float32) + bt_ref[...]    # (C, N)

    t_ref[0] = t
    # Fused BatchNorm partial statistics (no extra pass over t later).
    sum_ref[0] = jnp.sum(t, axis=-1, keepdims=True)
    ssq_ref[0] = jnp.sum(t * t, axis=-1, keepdims=True)


def sa_bn_kernel(x_ref, t_ref, sum_ref, ssq_ref, out_ref):
    """Cross-batch BN (training-mode stats), ReLU, residual add.

    x_ref, t_ref, out_ref: (1, C, N) blocks; sum_ref/ssq_ref: full (B, C, 1).
    """
    count = float(sum_ref.shape[0] * x_ref.shape[2])                 # B * N
    mean = jnp.sum(sum_ref[...], axis=0) / count                     # (C, 1)
    ex2 = jnp.sum(ssq_ref[...], axis=0) / count                      # (C, 1)
    var = ex2 - mean * mean                                          # biased var
    inv_std = jax.lax.rsqrt(var + 1e-5)

    normed = (t_ref[0] - mean) * inv_std
    out_ref[0] = x_ref[0] + jnp.maximum(normed, 0.0)


def _vmem_limit_bytes(B, C, N):
    f32 = 4
    per_block = C * N * f32
    weights = ((C + C // 4) * C + C * C + 2 * C) * f32
    attn_tmp = 2 * N * N * f32
    est = 8 * per_block + weights + attn_tmp + (4 << 20)
    # Cap below v7x's 64 MiB physical VMEM, floor at a comfortable minimum.
    return int(min(max(est, 16 << 20), 60 << 20))


def sa_layer(x, wqk, wv, bv, wt, bt, *, compute_dtype=jnp.float32):
    """x: (B, C, N) f32; wqk: (C//4, C); wv, wt: (C, C); bv, bt: (C, 1)."""
    B, C, N = x.shape

    # Stack [W_v ; W_qk] so the split point (row C) stays sublane-aligned.
    wproj = jnp.concatenate([wv, wqk], axis=0).astype(compute_dtype)
    x_c = x.astype(compute_dtype)
    wt_c = wt.astype(compute_dtype)

    cp = pltpu.CompilerParams(
        dimension_semantics=("parallel",),
        vmem_limit_bytes=_vmem_limit_bytes(B, C, N))

    block_cn = lambda b: (b, 0, 0)
    vmem_full = pl.BlockSpec(memory_space=pltpu.MemorySpace.VMEM)

    t, ssum, ssq = pl.pallas_call(
        sa_attn_kernel,
        out_shape=(jax.ShapeDtypeStruct((B, C, N), jnp.float32),
                   jax.ShapeDtypeStruct((B, C, 1), jnp.float32),
                   jax.ShapeDtypeStruct((B, C, 1), jnp.float32)),
        grid=(B,),
        in_specs=[pl.BlockSpec((1, C, N), block_cn),   # x
                  vmem_full,                           # wproj
                  vmem_full,                           # bv
                  vmem_full,                           # wt
                  vmem_full],                          # bt
        out_specs=(pl.BlockSpec((1, C, N), block_cn),
                   pl.BlockSpec((1, C, 1), block_cn),
                   pl.BlockSpec((1, C, 1), block_cn)),
        compiler_params=cp,
    )(x_c, wproj, bv, wt_c, bt)

    out = pl.pallas_call(
        sa_bn_kernel,
        out_shape=jax.ShapeDtypeStruct((B, C, N), jnp.float32),
        grid=(B,),
        in_specs=[pl.BlockSpec((1, C, N), block_cn),   # x (f32, for residual)
                  pl.BlockSpec((1, C, N), block_cn),   # t
                  vmem_full,                           # per-batch sums
                  vmem_full],                          # per-batch sumsq
        out_specs=pl.BlockSpec((1, C, N), block_cn),
        compiler_params=cp,
    )(x, t, ssum, ssq)

    return out


def sa_layer_ref(x, wqk, wv, bv, wt, bt):
    """Pure-JAX reference mirroring the PyTorch forward (training-mode BN)."""
    xk = jnp.einsum('oc,bcn->bon', wqk, x)                 # k_conv(x)
    xq = jnp.transpose(xk, (0, 2, 1))                      # q_conv(x).permute
    energy = jnp.einsum('bno,bom->bnm', xq, xk)
    attn = jax.nn.softmax(energy, axis=-1)
    attn = attn / (1e-9 + attn.sum(axis=1, keepdims=True))
    xv = jnp.einsum('oc,bcn->bon', wv, x) + bv[None]
    xr = jnp.einsum('bcn,bnm->bcm', xv, attn)
    t = jnp.einsum('oc,bcn->bon', wt, x - xr) + bt[None]
    mean = t.mean(axis=(0, 2), keepdims=True)
    var = ((t - mean) ** 2).mean(axis=(0, 2), keepdims=True)
    normed = (t - mean) / jnp.sqrt(var + 1e-5)
    return x + jnp.maximum(normed, 0.0)


if __name__ == "__main__":
    B, C, N = 2, 16, 16  # channels=16 -> q/k project to channels//4 = 4

    key = jax.random.PRNGKey(0)
    k_x, k_qk, k_v, k_bv, k_t, k_bt = jax.random.split(key, 6)

    x = jax.random.normal(k_x, (B, C, N), dtype=jnp.float32)
    wqk = jax.random.normal(k_qk, (C // 4, C), dtype=jnp.float32) * 0.2
    wv = jax.random.normal(k_v, (C, C), dtype=jnp.float32) * 0.2
    bv = jax.random.normal(k_bv, (C, 1), dtype=jnp.float32) * 0.1
    wt = jax.random.normal(k_t, (C, C), dtype=jnp.float32) * 0.2
    bt = jax.random.normal(k_bt, (C, 1), dtype=jnp.float32) * 0.1

    out = sa_layer(x, wqk, wv, bv, wt, bt)
    out = jax.block_until_ready(out)

    ref = sa_layer_ref(x, wqk, wv, bv, wt, bt)
    assert out.shape == (B, C, N)
    assert jnp.allclose(out, ref, atol=1e-4, rtol=1e-4), "mismatch vs JAX reference"

    print("KERNEL_OK")
</pallas_src>

<mosaic_0001>
module attributes {stable_mosaic.version = 11 : i64} {
  func.func @sa_attn_kernel(%arg0: i32, %arg1: memref<1x16x16xf32, #tpu.memory_space<vmem>>, %arg2: memref<20x16xf32, #tpu.memory_space<vmem>>, %arg3: memref<16x1xf32, #tpu.memory_space<vmem>>, %arg4: memref<16x16xf32, #tpu.memory_space<vmem>>, %arg5: memref<16x1xf32, #tpu.memory_space<vmem>>, %arg6: memref<1x16x16xf32, #tpu.memory_space<vmem>>, %arg7: memref<1x16x1xf32, #tpu.memory_space<vmem>>, %arg8: memref<1x16x1xf32, #tpu.memory_space<vmem>>) attributes {dimension_semantics = [#tpu.dimension_semantics<parallel>], iteration_bounds = array<i64: 2>, scalar_prefetch = 0 : i64, scratch_operands = 0 : i64, tpu.core_type = #tpu.core_type<tc>, window_params = [{transform_indices = @transform_0, window_bounds = array<i64: 1, 16, 16>}, {pipeline_mode = #tpu.pipeline_mode<synchronous>, transform_indices = @transform_1, window_bounds = array<i64: 20, 16>}, {pipeline_mode = #tpu.pipeline_mode<synchronous>, transform_indices = @transform_2, window_bounds = array<i64: 16, 1>}, {pipeline_mode = #tpu.pipeline_mode<synchronous>, transform_indices = @transform_3, window_bounds = array<i64: 16, 16>}, {pipeline_mode = #tpu.pipeline_mode<synchronous>, transform_indices = @transform_4, window_bounds = array<i64: 16, 1>}, {transform_indices = @transform_5, window_bounds = array<i64: 1, 16, 16>}, {transform_indices = @transform_6, window_bounds = array<i64: 1, 16, 1>}, {transform_indices = @transform_7, window_bounds = array<i64: 1, 16, 1>}]} {
    %c0 = arith.constant 0 : index
    %c0_0 = arith.constant 0 : index
    %c0_1 = arith.constant 0 : index
    %0 = vector.load %arg1[%c0, %c0_0, %c0_1] : memref<1x16x16xf32, #tpu.memory_space<vmem>>, vector<1x16x16xf32>
    %1 = vector.shape_cast %0 : vector<1x16x16xf32> to vector<16x16xf32>
    %c0_2 = arith.constant 0 : index
    %c0_3 = arith.constant 0 : index
    %2 = vector.load %arg2[%c0_2, %c0_3] : memref<20x16xf32, #tpu.memory_space<vmem>>, vector<20x16xf32>
    %cst = arith.constant dense<0.000000e+00> : vector<20x16xf32>
    %3 = tpu.matmul %2, %1, %cst {dimension_numbers = #tpu.dot_dimension_numbers<[1], [0], [0], [1], [0, 0, 1, 1], [], []>} : vector<20x16xf32>, vector<16x16xf32>, vector<20x16xf32> -> vector<20x16xf32>
    %4 = vector.extract_strided_slice %3 {offsets = [0, 0], sizes = [16, 16], strides = [1, 1]} : vector<20x16xf32> to vector<16x16xf32>
    %c0_4 = arith.constant 0 : index
    %c0_5 = arith.constant 0 : index
    %5 = vector.load %arg3[%c0_4, %c0_5] : memref<16x1xf32, #tpu.memory_space<vmem>>, vector<16x1xf32>
    %6 = vector.broadcast %5 : vector<16x1xf32> to vector<16x16xf32>
    %7 = arith.addf %4, %6 : vector<16x16xf32>
    %8 = vector.extract_strided_slice %3 {offsets = [16, 0], sizes = [4, 16], strides = [1, 1]} : vector<20x16xf32> to vector<4x16xf32>
    %cst_6 = arith.constant dense<0.000000e+00> : vector<16x16xf32>
    %9 = tpu.matmul %8, %8, %cst_6 {dimension_numbers = #tpu.dot_dimension_numbers<[0], [0], [1], [1], [0, 1, 1, 1], [], []>} : vector<4x16xf32>, vector<4x16xf32>, vector<16x16xf32> -> vector<16x16xf32>
    %cst_7 = arith.constant dense<0xFF800000> : vector<16xf32>
    %10 = vector.multi_reduction <maximumf>, %9, %cst_7 [1] : vector<16x16xf32> to vector<16xf32>
    %11 = vector.shape_cast %10 : vector<16xf32> to vector<16x1xf32>
    %12 = vector.broadcast %11 : vector<16x1xf32> to vector<16x16xf32>
    %13 = arith.subf %9, %12 : vector<16x16xf32>
    %14 = math.exp %13 : vector<16x16xf32>
    %cst_8 = arith.constant dense<0.000000e+00> : vector<16xf32>
    %15 = vector.multi_reduction <add>, %14, %cst_8 [1] : vector<16x16xf32> to vector<16xf32>
    %16 = vector.shape_cast %15 : vector<16xf32> to vector<16x1xf32>
    %17 = tpu.reciprocal %16 : vector<16x1xf32> -> vector<16x1xf32>
    %18 = vector.broadcast %17 : vector<16x1xf32> to vector<16x16xf32>
    %19 = arith.mulf %14, %18 : vector<16x16xf32>
    %cst_9 = arith.constant dense<0.000000e+00> : vector<16xf32>
    %20 = vector.multi_reduction <add>, %19, %cst_9 [0] : vector<16x16xf32> to vector<16xf32>
    %21 = vector.shape_cast %20 : vector<16xf32> to vector<1x16xf32>
    %cst_10 = arith.constant 9.99999971E-10 : f32
    %22 = vector.broadcast %cst_10 : f32 to vector<1x16xf32>
    %23 = arith.addf %22, %21 : vector<1x16xf32>
    %24 = tpu.reciprocal %23 : vector<1x16xf32> -> vector<1x16xf32>
    %25 = vector.broadcast %24 : vector<1x16xf32> to vector<16x16xf32>
    %26 = arith.mulf %19, %25 : vector<16x16xf32>
    %cst_11 = arith.constant dense<0.000000e+00> : vector<16x16xf32>
    %27 = tpu.matmul %7, %26, %cst_11 {dimension_numbers = #tpu.dot_dimension_numbers<[1], [0], [0], [1], [0, 0, 1, 1], [], []>} : vector<16x16xf32>, vector<16x16xf32>, vector<16x16xf32> -> vector<16x16xf32>
    %c0_12 = arith.constant 0 : index
    %c0_13 = arith.constant 0 : index
    %28 = vector.load %arg4[%c0_12, %c0_13] : memref<16x16xf32, #tpu.memory_space<vmem>>, vector<16x16xf32>
    %29 = arith.subf %1, %27 : vector<16x16xf32>
    %cst_14 = arith.constant dense<0.000000e+00> : vector<16x16xf32>
    %30 = tpu.matmul %28, %29, %cst_14 {dimension_numbers = #tpu.dot_dimension_numbers<[1], [0], [0], [1], [0, 0, 1, 1], [], []>} : vector<16x16xf32>, vector<16x16xf32>, vector<16x16xf32> -> vector<16x16xf32>
    %c0_15 = arith.constant 0 : index
    %c0_16 = arith.constant 0 : index
    %31 = vector.load %arg5[%c0_15, %c0_16] : memref<16x1xf32, #tpu.memory_space<vmem>>, vector<16x1xf32>
    %32 = vector.broadcast %31 : vector<16x1xf32> to vector<16x16xf32>
    %33 = arith.addf %30, %32 : vector<16x16xf32>
    %c0_17 = arith.constant 0 : index
    %c0_18 = arith.constant 0 : index
    %c0_19 = arith.constant 0 : index
    %34 = vector.load %arg6[%c0_17, %c0_18, %c0_19] : memref<1x16x16xf32, #tpu.memory_space<vmem>>, vector<1x16x16xf32>
    %35 = vector.shape_cast %34 : vector<1x16x16xf32> to vector<16x16xf32>
    %36 = vector.shape_cast %33 : vector<16x16xf32> to vector<1x16x16xf32>
    tpu.vector_store %arg6[%c0_17, %c0_18, %c0_19], %36 {strides = array<i32>} : memref<1x16x16xf32, #tpu.memory_space<vmem>>, vector<1x16x16xf32>,
    %cst_20 = arith.constant dense<0.000000e+00> : vector<16xf32>
    %37 = vector.multi_reduction <add>, %33, %cst_20 [1] : vector<16x16xf32> to vector<16xf32>
    %38 = vector.shape_cast %37 : vector<16xf32> to vector<16x1xf32>
    %c0_21 = arith.constant 0 : index
    %c0_22 = arith.constant 0 : index
    %c0_23 = arith.constant 0 : index
    %39 = vector.load %arg7[%c0_21, %c0_22, %c0_23] : memref<1x16x1xf32, #tpu.memory_space<vmem>>, vector<1x16x1xf32>
    %40 = vector.shape_cast %39 : vector<1x16x1xf32> to vector<16x1xf32>
    %41 = vector.shape_cast %38 : vector<16x1xf32> to vector<1x16x1xf32>
    tpu.vector_store %arg7[%c0_21, %c0_22, %c0_23], %41 {strides = array<i32>} : memref<1x16x1xf32, #tpu.memory_space<vmem>>, vector<1x16x1xf32>,
    %42 = arith.mulf %33, %33 : vector<16x16xf32>
    %cst_24 = arith.constant dense<0.000000e+00> : vector<16xf32>
    %43 = vector.multi_reduction <add>, %42, %cst_24 [1] : vector<16x16xf32> to vector<16xf32>
    %44 = vector.shape_cast %43 : vector<16xf32> to vector<16x1xf32>
    %c0_25 = arith.constant 0 : index
    %c0_26 = arith.constant 0 : index
    %c0_27 = arith.constant 0 : index
    %45 = vector.load %arg8[%c0_25, %c0_26, %c0_27] : memref<1x16x1xf32, #tpu.memory_space<vmem>>, vector<1x16x1xf32>
    %46 = vector.shape_cast %45 : vector<1x16x1xf32> to vector<16x1xf32>
    %47 = vector.shape_cast %44 : vector<16x1xf32> to vector<1x16x1xf32>
    tpu.vector_store %arg8[%c0_25, %c0_26, %c0_27], %47 {strides = array<i32>} : memref<1x16x1xf32, #tpu.memory_space<vmem>>, vector<1x16x1xf32>,
    return
  }
  func.func @transform_0(%arg0: i32) -> (i32, i32, i32) {
    %c0_i32 = arith.constant 0 : i32
    %c0_i32_0 = arith.constant 0 : i32
    %c0_i32_1 = arith.constant 0 : i32
    return %arg0, %c0_i32, %c0_i32_0 : i32, i32, i32
  }
  func.func @transform_1(%arg0: i32) -> (i32, i32) {
    %c0_i32 = arith.constant 0 : i32
    %c0_i32_0 = arith.constant 0 : i32
    %c0_i32_1 = arith.constant 0 : i32
    return %c0_i32, %c0_i32_0 : i32, i32
  }
  func.func @transform_2(%arg0: i32) -> (i32, i32) {
    %c0_i32 = arith.constant 0 : i32
    %c0_i32_0 = arith.constant 0 : i32
    %c0_i32_1 = arith.constant 0 : i32
    return %c0_i32, %c0_i32_0 : i32, i32
  }
  func.func @transform_3(%arg0: i32) -> (i32, i32) {
    %c0_i32 = arith.constant 0 : i32
    %c0_i32_0 = arith.constant 0 : i32
    %c0_i32_1 = arith.constant 0 : i32
    return %c0_i32, %c0_i32_0 : i32, i32
  }
  func.func @transform_4(%arg0: i32) -> (i32, i32) {
    %c0_i32 = arith.constant 0 : i32
    %c0_i32_0 = arith.constant 0 : i32
    %c0_i32_1 = arith.constant 0 : i32
    return %c0_i32, %c0_i32_0 : i32, i32
  }
  func.func @transform_5(%arg0: i32) -> (i32, i32, i32) {
    %c0_i32 = arith.constant 0 : i32
    %c0_i32_0 = arith.constant 0 : i32
    %c0_i32_1 = arith.constant 0 : i32
    return %arg0, %c0_i32, %c0_i32_0 : i32, i32, i32
  }
  func.func @transform_6(%arg0: i32) -> (i32, i32, i32) {
    %c0_i32 = arith.constant 0 : i32
    %c0_i32_0 = arith.constant 0 : i32
    %c0_i32_1 = arith.constant 0 : i32
    return %arg0, %c0_i32, %c0_i32_0 : i32, i32, i32
  }
  func.func @transform_7(%arg0: i32) -> (i32, i32, i32) {
    %c0_i32 = arith.constant 0 : i32
    %c0_i32_0 = arith.constant 0 : i32
    %c0_i32_1 = arith.constant 0 : i32
    return %arg0, %c0_i32, %c0_i32_0 : i32, i32, i32
  }
}

</mosaic_0001>

<llo_original>
// kernel: tpu_custom_call.1
$region0: #{tpu_custom_call.1}
  #allocation0 [shape = 'u32[]', space=smem, size = 0x4, offset = 0x4, fixed_abs, tag = 'smem constant byte address 0x4 - core index']
  #allocation1 [shape = 'u32[72,128]{1,0:T(1,128)}', space=vmem, size = 0x9000, scoped, tag = 'internal scratch']
  %s0 = inlined_call_operand.vmem [shape: f32[2,16,16], index: 0, kind: input, shape index: {}]
  %s1 = inlined_call_operand.vmem [shape: f32[20,16], index: 1, kind: input, shape index: {}]
  %s2 = inlined_call_operand.vmem [shape: f32[16,1], index: 2, kind: input, shape index: {}]
  %s3 = inlined_call_operand.vmem [shape: f32[16,16], index: 3, kind: input, shape index: {}]
  %s4 = inlined_call_operand.vmem [shape: f32[16,1], index: 4, kind: input, shape index: {}]
  %s5 = inlined_call_operand.hbm [shape: f32[2,16,16], index: 5, kind: output, shape index: {0}]
  %s6 = inlined_call_operand.vmem [shape: f32[2,16,1], index: 6, kind: output, shape index: {1}]
  %s7 = inlined_call_operand.vmem [shape: f32[2,16,1], index: 7, kind: output, shape index: {2}]
  %8 = xla_tuple %s5, %s6, %s7
  %s9 = sld [smem:[#allocation0]]
  $region69: #{tpu_custom_call.1} parent=0
    _
  %s11 = ssub.s32 1, %s9
  %s12 = scalar_select 0, %s11, %s9
  $region1: #{tpu_custom_call.1} parent=0
    #allocation2 [shape = 'u8[16384]{0}', space=vmem, size = 0x4000, scoped, tag = 'output window, operand 0']
    #allocation3 [shape = 's32[2]{0}', space=sflag, size = 0x8, scoped, tag = 'scoped memory for tpu_custom_call.1']
    %13 = vsyncpa [#allocation3], 0
    %s14 = scalar_lea.sflag [#allocation3], 1
    %15 = vsyncpa %s14, 0
    loop: start=0, step=1, limit=4
    $region2: #{tpu_custom_call.1} parent=1 // loop_pre_header
      _
    $region3: #{tpu_custom_call.1} parent=1 // loop_header
      %s17 = sphi 0, %s21
      %p18 = scmp.ge.s32.totalorder %s17, 4
      %s27 = sphi 0, %s29
      %s30 = sphi 0, %s27
      %s31 = sphi 0, %s30
      %s47 = sphi 0, %s31
      %s51 = sphi 0, %s51
      %s53 = sphi 0, %s51
      %s54 = sphi 0, %s53
      %s68 = sphi 0, %s54
      %s72 = sphi 0, %s72
      %s74 = sphi 0, %s72
      %s75 = sphi 0, %s74
      %s89 = sphi 0, %s75
      %s93 = sphi 0, %s93
      %s95 = sphi 0, %s93
      %s96 = sphi 0, %s95
      %s110 = sphi 0, %s96
      %s114 = sphi 0, %s114
      %s116 = sphi 0, %s114
      %s117 = sphi 0, %s116
      %s131 = sphi 0, %s117
      %s137 = sphi 0, %s139
      %s140 = sphi 0, %s137
      %s141 = sphi 0, %s140
      %s157 = sphi 0, %s141
      %s163 = sphi 0, %s165
      %s166 = sphi 0, %s163
      %s167 = sphi 0, %s166
      %s183 = sphi 0, %s167
      %s189 = sphi 0, %s191
      %s192 = sphi 0, %s189
      %s193 = sphi 0, %s192
      %s209 = sphi 0, %s193
    $region4: #{tpu_custom_call.1} parent=1 // loop_header_branch
      %20 = sbr.rel (%p18) target = $region8
    $region5: #{tpu_custom_call.1} parent=1 // loop_body
      %s22 = ssub.s32 %s17, 1
      %s23 = ssub.s32 %s17, 2
      %s24 = sadd.s32 %s17, 1
      %s25 = ssub.s32 %s17, %s24
      %p26 = scmp.eq.s32.totalorder %s25, 0
      %s28 = sadd.s32 %s27, 1
      %s29 = scalar_select %p26, %s27, %s28
      %p32 = pneg %p26
      %p33 = scmp.eq.s32.totalorder %s17, 1
      %p34 = por %p32, %p33
      %p35 = scmp.ne.s32.totalorder %s27, %s30
      %p36 = scmp.eq.s32.totalorder %s17, 0
      %p37 = por %p35, %p36
      %p38 = scmp.ne.s32.totalorder %s27, %s30
      %p39 = scmp.eq.s32.totalorder %s22, 1
      %p40 = por %p38, %p39
      %p41 = scmp.ne.s32.totalorder %s30, %s31
      %p42 = scmp.eq.s32.totalorder %s22, 0
      %p43 = por %p41, %p42
      %p44 = scmp.ne.s32.totalorder %s30, %s31
      %p45 = scmp.eq.s32.totalorder %s23, 1
      %p46 = por %p44, %p45
      %p48 = scmp.ne.s32.totalorder %s31, %s47
      %p49 = scmp.eq.s32.totalorder %s23, 0
      %p50 = por %p48, %p49
      %s52 = sadd.s32 %s51, 1
      %p55 = scmp.eq.s32.totalorder %s17, 1
      %p56 = scmp.ne.s32.totalorder %s51, %s53
      %p57 = scmp.eq.s32.totalorder %s17, 0
      %p58 = por %p56, %p57
      %p59 = scmp.ne.s32.totalorder %s51, %s53
      %p60 = scmp.eq.s32.totalorder %s22, 1
      %p61 = por %p59, %p60
      %p62 = scmp.ne.s32.totalorder %s53, %s54
      %p63 = scmp.eq.s32.totalorder %s22, 0
      %p64 = por %p62, %p63
      %p65 = scmp.ne.s32.totalorder %s53, %s54
      %p66 = scmp.eq.s32.totalorder %s23, 1
      %p67 = por %p65, %p66
      %p69 = scmp.ne.s32.totalorder %s54, %s68
      %p70 = scmp.eq.s32.totalorder %s23, 0
      %p71 = por %p69, %p70
      %s73 = sadd.s32 %s72, 1
      %p76 = scmp.eq.s32.totalorder %s17, 1
      %p77 = scmp.ne.s32.totalorder %s72, %s74
      %p78 = scmp.eq.s32.totalorder %s17, 0
      %p79 = por %p77, %p78
      %p80 = scmp.ne.s32.totalorder %s72, %s74
      %p81 = scmp.eq.s32.totalorder %s22, 1
      %p82 = por %p80, %p81
      %p83 = scmp.ne.s32.totalorder %s74, %s75
      %p84 = scmp.eq.s32.totalorder %s22, 0
      %p85 = por %p83, %p84
      %p86 = scmp.ne.s32.totalorder %s74, %s75
      %p87 = scmp.eq.s32.totalorder %s23, 1
      %p88 = por %p86, %p87
      %p90 = scmp.ne.s32.totalorder %s75, %s89
      %p91 = scmp.eq.s32.totalorder %s23, 0
      %p92 = por %p90, %p91
      %s94 = sadd.s32 %s93, 1
      %p97 = scmp.eq.s32.totalorder %s17, 1
      %p98 = scmp.ne.s32.totalorder %s93, %s95
      %p99 = scmp.eq.s32.totalorder %s17, 0
      %p100 = por %p98, %p99
      %p101 = scmp.ne.s32.totalorder %s93, %s95
      %p102 = scmp.eq.s32.totalorder %s22, 1
      %p103 = por %p101, %p102
      %p104 = scmp.ne.s32.totalorder %s95, %s96
      %p105 = scmp.eq.s32.totalorder %s22, 0
      %p106 = por %p104, %p105
      %p107 = scmp.ne.s32.totalorder %s95, %s96
      %p108 = scmp.eq.s32.totalorder %s23, 1
      %p109 = por %p107, %p108
      %p111 = scmp.ne.s32.totalorder %s96, %s110
      %p112 = scmp.eq.s32.totalorder %s23, 0
      %p113 = por %p111, %p112
      %s115 = sadd.s32 %s114, 1
      %p118 = scmp.eq.s32.totalorder %s17, 1
      %p119 = scmp.ne.s32.totalorder %s114, %s116
      %p120 = scmp.eq.s32.totalorder %s17, 0
      %p121 = por %p119, %p120
      %p122 = scmp.ne.s32.totalorder %s114, %s116
      %p123 = scmp.eq.s32.totalorder %s22, 1
      %p124 = por %p122, %p123
      %p125 = scmp.ne.s32.totalorder %s116, %s117
      %p126 = scmp.eq.s32.totalorder %s22, 0
      %p127 = por %p125, %p126
      %p128 = scmp.ne.s32.totalorder %s116, %s117
      %p129 = scmp.eq.s32.totalorder %s23, 1
      %p130 = por %p128, %p129
      %p132 = scmp.ne.s32.totalorder %s117, %s131
      %p133 = scmp.eq.s32.totalorder %s23, 0
      %p134 = por %p132, %p133
      %s135 = ssub.s32 %s17, %s24
      %p136 = scmp.eq.s32.totalorder %s135, 0
      %s138 = sadd.s32 %s137, 1
      %s139 = scalar_select %p136, %s137, %s138
      %p142 = pneg %p136
      %p143 = scmp.eq.s32.totalorder %s17, 1
      %p144 = por %p142, %p143
      %p145 = scmp.ne.s32.totalorder %s137, %s140
      %p146 = scmp.eq.s32.totalorder %s17, 0
      %p147 = por %p145, %p146
      %p148 = scmp.ne.s32.totalorder %s137, %s140
      %p149 = scmp.eq.s32.totalorder %s22, 1
      %p150 = por %p148, %p149
      %p151 = scmp.ne.s32.totalorder %s140, %s141
      %p152 = scmp.eq.s32.totalorder %s22, 0
      %p153 = por %p151, %p152
      %p154 = scmp.ne.s32.totalorder %s140, %s141
      %p155 = scmp.eq.s32.totalorder %s23, 1
      %p156 = por %p154, %p155
      %p158 = scmp.ne.s32.totalorder %s141, %s157
      %p159 = scmp.eq.s32.totalorder %s23, 0
      %p160 = por %p158, %p159
      %s161 = ssub.s32 %s17, %s24
      %p162 = scmp.eq.s32.totalorder %s161, 0
      %s164 = sadd.s32 %s163, 1
      %s165 = scalar_select %p162, %s163, %s164
      %p168 = pneg %p162
      %p169 = scmp.eq.s32.totalorder %s17, 1
      %p170 = por %p168, %p169
      %p171 = scmp.ne.s32.totalorder %s163, %s166
      %p172 = scmp.eq.s32.totalorder %s17, 0
      %p173 = por %p171, %p172
      %p174 = scmp.ne.s32.totalorder %s163, %s166
      %p175 = scmp.eq.s32.totalorder %s22, 1
      %p176 = por %p174, %p175
      %p177 = scmp.ne.s32.totalorder %s166, %s167
      %p178 = scmp.eq.s32.totalorder %s22, 0
      %p179 = por %p177, %p178
      %p180 = scmp.ne.s32.totalorder %s166, %s167
      %p181 = scmp.eq.s32.totalorder %s23, 1
      %p182 = por %p180, %p181
      %p184 = scmp.ne.s32.totalorder %s167, %s183
      %p185 = scmp.eq.s32.totalorder %s23, 0
      %p186 = por %p184, %p185
      %s187 = ssub.s32 %s17, %s24
      %p188 = scmp.eq.s32.totalorder %s187, 0
      %s190 = sadd.s32 %s189, 1
      %s191 = scalar_select %p188, %s189, %s190
      %p194 = pneg %p188
      %p195 = scmp.eq.s32.totalorder %s17, 1
      %p196 = por %p194, %p195
      %p197 = scmp.ne.s32.totalorder %s189, %s192
      %p198 = scmp.eq.s32.totalorder %s17, 0
      %p199 = por %p197, %p198
      %p200 = scmp.ne.s32.totalorder %s189, %s192
      %p201 = scmp.eq.s32.totalorder %s22, 1
      %p202 = por %p200, %p201
      %p203 = scmp.ne.s32.totalorder %s192, %s193
      %p204 = scmp.eq.s32.totalorder %s22, 0
      %p205 = por %p203, %p204
      %p206 = scmp.ne.s32.totalorder %s192, %s193
      %p207 = scmp.eq.s32.totalorder %s23, 1
      %p208 = por %p206, %p207
      %p210 = scmp.ne.s32.totalorder %s193, %s209
      %p211 = scmp.eq.s32.totalorder %s23, 0
      %p212 = por %p210, %p211
      %p213 = scmp.le.s32.totalorder 1, %s17
      %p214 = scmp.lt.s32.totalorder %s17, 3
      %p215 = pnand %p213, %p214
      %p216 = pneg %p215
      // Predicated region
      $region9: #{tpu_custom_call.1} parent=5 // pred_check
        _
      $region10: #{tpu_custom_call.1} parent=5 // pred_check_branch
        %218 = sbr.rel (%p215) target = $region12
      $region11: #{tpu_custom_call.1} parent=5 // pred_region
        %s219 = ssub.s32 %s17, 1
        // Predicated region
        $region13: #{tpu_custom_call.1} parent=11 // pred_check
          %p220 = pneg %p64
        $region14: #{tpu_custom_call.1} parent=11 // pred_check_branch
          %222 = sbr.rel (%p220) target = $region16
        $region15: #{tpu_custom_call.1} parent=11 // pred_region
          _
        $region16: #{tpu_custom_call.1} parent=11 // pred_fallthru
          _
        // Predicated region
        $region17: #{tpu_custom_call.1} parent=11 // pred_check
          %p223 = pneg %p85
        $region18: #{tpu_custom_call.1} parent=11 // pred_check_branch
          %225 = sbr.rel (%p223) target = $region20
        $region19: #{tpu_custom_call.1} parent=11 // pred_region
          _
        $region20: #{tpu_custom_call.1} parent=11 // pred_fallthru
          _
        // Predicated region
        $region21: #{tpu_custom_call.1} parent=11 // pred_check
          %p226 = pneg %p106
        $region22: #{tpu_custom_call.1} parent=11 // pred_check_branch
          %228 = sbr.rel (%p226) target = $region24
        $region23: #{tpu_custom_call.1} parent=11 // pred_region
          _
        $region24: #{tpu_custom_call.1} parent=11 // pred_fallthru
          _
        // Predicated region
        $region25: #{tpu_custom_call.1} parent=11 // pred_check
          %p229 = pneg %p127
        $region26: #{tpu_custom_call.1} parent=11 // pred_check_branch
          %231 = sbr.rel (%p229) target = $region28
        $region27: #{tpu_custom_call.1} parent=11 // pred_region
          _
        $region28: #{tpu_custom_call.1} parent=11 // pred_fallthru
          _
      $region12: #{tpu_custom_call.1} parent=5 // pred_fallthru
        _
      %p232 = scmp.lt.s32.totalorder %s17, 2
      // Predicated region
      $region29: #{tpu_custom_call.1} parent=5 // pred_check
        %p233 = pneg %p232
      $region30: #{tpu_custom_call.1} parent=5 // pred_check_branch
        %235 = sbr.rel (%p233) target = $region32
      $region31: #{tpu_custom_call.1} parent=5 // pred_region
        // Predicated region
        $region33: #{tpu_custom_call.1} parent=31 // pred_check
          %p236 = pneg %p37
        $region34: #{tpu_custom_call.1} parent=31 // pred_check_branch
          %238 = sbr.rel (%p236) target = $region36
        $region35: #{tpu_custom_call.1} parent=31 // pred_region
          %p239 = scmp.lt.s32.totalorder %s17, 1
          %s240 = scalar_select %p239, %s17, 1
          %s241 = smul.addr %s240, 2
          %s242 = smul.addr %s241, 8
          %s243 = scalar_lea.vmem %s0, %s242
        $region36: #{tpu_custom_call.1} parent=31 // pred_fallthru
          _
      $region32: #{tpu_custom_call.1} parent=5 // pred_fallthru
        _
      %p244 = scmp.le.s32.totalorder 1, %s17
      %p245 = scmp.lt.s32.totalorder %s17, 3
      %p246 = pnand %p244, %p245
      %p247 = pneg %p246
      // Predicated region
      $region37: #{tpu_custom_call.1} parent=5 // pred_check
        _
      $region38: #{tpu_custom_call.1} parent=5 // pred_check_branch
        %249 = sbr.rel (%p246) target = $region40
      $region39: #{tpu_custom_call.1} parent=5 // pred_region
        %s250 = ssub.s32 %s17, 1
        %p251 = scmp.lt.s32.totalorder %s22, 1
        %s252 = scalar_select %p251, %s22, 1
        %s253 = smul.addr %s252, 2
        %s254 = smul.addr %s253, 8
        %s255 = scalar_lea.vmem %s0, %s254
        %p256 = pneg %p43
        %p257 = pneg %p40
        %p258 = pneg %p64
        %p259 = pneg %p61
        %p260 = pneg %p85
        %p261 = pneg %p82
        %p262 = pneg %p106
        %p263 = pneg %p103
        %p264 = pneg %p127
        %p265 = pneg %p124
        %p266 = pneg %p153
        %p267 = pneg %p150
        %s268 = sand.u32 %s140, 1
        %s269 = scalar_lea.sflag [#allocation3], %s268
        %s270 = sand.u32 %s140, 1
        %s271 = smul.addr %s270, 16
        %s272 = scalar_lea.vmem [#allocation2], %s271
        %p273 = pneg %p179
        %p274 = pneg %p176
        %p275 = scmp.lt.s32.totalorder %s22, 1
        %s276 = scalar_select %p275, %s22, 1
        %s277 = smul.addr %s276, 2
        %s278 = smul.addr %s277, 8
        %s279 = scalar_lea.vmem %s6, %s278
        %p280 = pneg %p205
        %p281 = pneg %p202
        %p282 = scmp.lt.s32.totalorder %s22, 1
        %s283 = scalar_select %p282, %s22, 1
        %s284 = smul.addr %s283, 2
        %s285 = smul.addr %s284, 8
        %s286 = scalar_lea.vmem %s7, %s285
        %p287 = scmp.lt.s32.totalorder %s22, 1
        %s288 = scalar_select %p287, %s22, 1
        %s289 = smul.addr %s288, 2
        %s290 = smul.addr %s289, 8
        %s291 = scalar_lea.vmem %s0, %s290
        %p292 = scmp.lt.s32.totalorder %s22, 1
        %s293 = scalar_select %p292, %s22, 1
        %s294 = smul.addr %s293, 2
        %s295 = smul.addr %s294, 8
        %s296 = scalar_lea.vmem %s6, %s295
        %p297 = scmp.lt.s32.totalorder %s22, 1
        %s298 = scalar_select %p297, %s22, 1
        %s299 = smul.addr %s298, 2
        %s300 = smul.addr %s299, 8
        %s301 = scalar_lea.vmem %s7, %s300
        %v302 = vld [vmem:[%s291] sm:$0xff]
        %v303 = vld [vmem:[%s291 + $0x8] sm:$0xff]
        %v304 = vld [vmem:[%s1] sm:$0xff]
        %v305 = vld [vmem:[%s1 + $0x8] sm:$0xff]
        %v306 = vld [vmem:[%s1 + $0x10] sm:$0xf]
        %vm307 = vcmask 130048
        %v309 = vsel %vm307, %v304, 0
        %v312 = vsel %vm307, %v305, 0
        %v315 = vsel %vm307, %v306, 0
        %317 = vmatpush.msra.mxu0 0.0
        %318 = vmatpush.msra.mxu0 0.0
        %319 = vmatpush.msra.mxu0 0.0
        %320 = vmatpush.msra.mxu0 0.0
        %321 = vmatpush.msra.mxu0 0.0
        %322 = vmatpush.msra.mxu0 0.0
        %323 = vmatpush.msra.mxu0 0.0
        %324 = vmatpush.msra.mxu0 0.0
        %325 = vmatpush.msra.mxu0 0.0
        %326 = vmatpush.msra.mxu0 0.0
        %327 = vmatpush.msra.mxu0 0.0
        %328 = vmatpush.msra.mxu0 0.0
        %329 = vmatpush.msra.mxu0 0.0
        %330 = vmatpush.msra.mxu0 0.0
        %331 = vmatpush.msra.mxu0 %v303
        %332 = vmatpush.msra.mxu0 %v302
        %333 = vmatmul.f32.gmra.mxu0 %v309
        %v334 = vpop.f32.mrf.mxu0
        %v335 = vadd.f32 0.0, %v334
        %336 = vmatmul.f32.gmra.mxu0 %v312
        %v337 = vpop.f32.mrf.mxu0
        %v338 = vadd.f32 0.0, %v337
        %339 = vmatmul.f32.gmra.mxu0 %v315
        %v340 = vpop.f32.mrf.mxu0
        %v341 = vadd.f32 0.0, %v340
        %342 = vdwg.mxu0
        %v343 = vld [vmem:[%s2] sm:$0xff]
        %v344 = vld [vmem:[%s2 + $0x8] sm:$0xff]
        %346 = vset.pattern.permute.xlu0 0
        %347 = vperm.xlu0 %346, %v343
        %v348 = vpop.permute.xlu0 %347
        %351 = vset.pattern.permute.xlu0 0
        %352 = vperm.xlu0 %351, %v344
        %v353 = vpop.permute.xlu0 %352
        %v355 = vadd.f32 %v335, %v348
        %v356 = vadd.f32 %v338, %v353
        %357 = vxpose.xlu0.b32.start [1/16] %v341, 128
        %358 = vxpose.xlu0.b32.cont [2/16] 0.0, 128
        %359 = vxpose.xlu0.b32.cont [3/16] 0.0, 128
        %360 = vxpose.xlu0.b32.cont [4/16] 0.0, 128
        %361 = vxpose.xlu0.b32.cont [5/16] 0.0, 128
        %362 = vxpose.xlu0.b32.cont [6/16] 0.0, 128
        %363 = vxpose.xlu0.b32.cont [7/16] 0.0, 128
        %364 = vxpose.xlu0.b32.cont [8/16] 0.0, 128
        %365 = vxpose.xlu0.b32.cont [9/16] 0.0, 128
        %366 = vxpose.xlu0.b32.cont [10/16] 0.0, 128
        %367 = vxpose.xlu0.b32.cont [11/16] 0.0, 128
        %368 = vxpose.xlu0.b32.cont [12/16] 0.0, 128
        %369 = vxpose.xlu0.b32.cont [13/16] 0.0, 128
        %370 = vxpose.xlu0.b32.cont [14/16] 0.0, 128
        %371 = vxpose.xlu0.b32.cont [15/16] 0.0, 128
        %372 = vxpose.xlu0.b32.end [16/16] 0.0, 128
        %v373 = vpop.trf.xlu0
        %v374 = vpop.trf.xlu0
        %v375 = vpop.trf.xlu0
        %v376 = vpop.trf.xlu0
        %v377 = vpop.trf.xlu0
        %v378 = vpop.trf.xlu0
        %v379 = vpop.trf.xlu0
        %v380 = vpop.trf.xlu0
        %v381 = vpop.trf.xlu0
        %v382 = vpop.trf.xlu0
        %v383 = vpop.trf.xlu0
        %v384 = vpop.trf.xlu0
        %v385 = vpop.trf.xlu0
        %v386 = vpop.trf.xlu0
        %v387 = vpop.trf.xlu0
        %v388 = vpop.trf.xlu0
        %vm389 = vcmask 31744
        %v391 = vsel %vm389, %v373, 0
        %v394 = vsel %vm389, %v374, 0
        %vm396 = vcmask 1043456
        %v398 = vsel %vm396, %v341, 0
        %400 = vmatpush.msra.mxu0 0.0
        %401 = vmatpush.msra.mxu0 0.0
        %402 = vmatpush.msra.mxu0 0.0
        %403 = vmatpush.msra.mxu0 0.0
        %404 = vmatpush.msra.mxu0 0.0
        %405 = vmatpush.msra.mxu0 0.0
        %406 = vmatpush.msra.mxu0 0.0
        %407 = vmatpush.msra.mxu0 0.0
        %408 = vmatpush.msra.mxu0 0.0
        %409 = vmatpush.msra.mxu0 0.0
        %410 = vmatpush.msra.mxu0 0.0
        %411 = vmatpush.msra.mxu0 0.0
        %412 = vmatpush.msra.mxu0 0.0
        %413 = vmatpush.msra.mxu0 0.0
        %414 = vmatpush.msra.mxu0 0.0
        %415 = vmatpush.msra.mxu0 %v398
        %416 = vmatmul.f32.gmra.mxu0 %v391
        %v417 = vpop.f32.mrf.mxu0
        %v418 = vadd.f32 0.0, %v417
        %419 = vmatmul.f32.gmra.mxu0 %v394
        %v420 = vpop.f32.mrf.mxu0
        %v421 = vadd.f32 0.0, %v420
        %422 = vdwg.mxu0
        %v423 = vsel %vm307, %v418, -inf
        %424 = vmax.xlane.f32.xlu0 %v423
        %v425 = vpop.xlane.xlu0 %424
        %v426 = vsel %vm307, %v421, -inf
        %427 = vmax.xlane.f32.xlu0 %v426
        %v428 = vpop.xlane.xlu0 %427
        %v429 = vsub.f32 %v418, %v425
        %v430 = vsub.f32 %v421, %v428
        %v431 = vmul.f32 %v429, 1.442695
        %v432 = vpow.pop %v431
        %v433 = vmul.f32 %v430, 1.442695
        %v434 = vpow.pop %v433
        %v435 = vsel %vm307, %v432, 0.0
        %436 = vadd.xlane.f32.xlu0 %v435
        %v437 = vpop.xlane.xlu0 %436
        %v438 = vsel %vm307, %v434, 0.0
        %439 = vadd.xlane.f32.xlu0 %v438
        %v440 = vpop.xlane.xlu0 %439
        %v441 = vrcp.pop %v437
        %v442 = vmul.f32 %v437, %v441
        %v443 = vsub.f32 1.0, %v442
        %v444 = vmul.f32 %v441, %v443
        %v445 = vadd.f32 %v441, %v444
        %vm446 = vweird.f32 %v437
        %vm447 = vweird.f32 %v441
        %vm448 = vmor %vm446, %vm447
        %v449 = vsel %vm448, %v441, %v445
        %v450 = vand.u32 2147483647, %v437
        %vm451 = vcmp.eq.f32.partialorder %v450, 8.507059e+37
        %v452 = vand.u32 %v437, 2147483648
        %v453 = vor.u32 1.1754944e-38, %v452
        %v454 = vsel %vm451, %v453, %v449
        %v455 = vrcp.pop %v440
        %v456 = vmul.f32 %v440, %v455
        %v457 = vsub.f32 1.0, %v456
        %v458 = vmul.f32 %v455, %v457
        %v459 = vadd.f32 %v455, %v458
        %vm460 = vweird.f32 %v440
        %vm461 = vweird.f32 %v455
        %vm462 = vmor %vm460, %vm461
        %v463 = vsel %vm462, %v455, %v459
        %v464 = vand.u32 2147483647, %v440
        %vm465 = vcmp.eq.f32.partialorder %v464, 8.507059e+37
        %v466 = vand.u32 %v440, 2147483648
        %v467 = vor.u32 1.1754944e-38, %v466
        %v468 = vsel %vm465, %v467, %v463
        %v469 = vmul.f32 %v432, %v454
        %v470 = vmul.f32 %v434, %v468
        %v471 = vsel %vm307, %v469, 0.0
        %v472 = vsel %vm307, %v470, 0.0
        %v473 = vadd.f32 %v471, %v472
        %v474 = vrot.slane %v473, 4
        %v475 = vadd.f32 %v473, %v474
        %v476 = vrot.slane %v475, 2
        %v477 = vadd.f32 %v475, %v476
        %v478 = vrot.slane %v477, 1
        %v479 = vadd.f32 %v477, %v478
        %v480 = vadd.f32 %v479, 1e-09
        %v481 = vrcp.pop %v480
        %v482 = vmul.f32 %v480, %v481
        %v483 = vsub.f32 1.0, %v482
        %v484 = vmul.f32 %v481, %v483
        %v485 = vadd.f32 %v481, %v484
        %vm486 = vweird.f32 %v480
        %vm487 = vweird.f32 %v481
        %vm488 = vmor %vm486, %vm487
        %v489 = vsel %vm488, %v481, %v485
        %v490 = vand.u32 2147483647, %v480
        %vm491 = vcmp.eq.f32.partialorder %v490, 8.507059e+37
        %v492 = vand.u32 %v480, 2147483648
        %v493 = vor.u32 1.1754944e-38, %v492
        %v494 = vsel %vm491, %v493, %v489
        %v495 = vmul.f32 %v469, %v494
        %v496 = vmul.f32 %v470, %v494
        %v498 = vsel %vm307, %v355, 0
        %v501 = vsel %vm307, %v356, 0
        %503 = vmatpush.msra.mxu0 0.0
        %504 = vmatpush.msra.mxu0 0.0
        %505 = vmatpush.msra.mxu0 0.0
        %506 = vmatpush.msra.mxu0 0.0
        %507 = vmatpush.msra.mxu0 0.0
        %508 = vmatpush.msra.mxu0 0.0
        %509 = vmatpush.msra.mxu0 0.0
        %510 = vmatpush.msra.mxu0 0.0
        %511 = vmatpush.msra.mxu0 0.0
        %512 = vmatpush.msra.mxu0 0.0
        %513 = vmatpush.msra.mxu0 0.0
        %514 = vmatpush.msra.mxu0 0.0
        %515 = vmatpush.msra.mxu0 0.0
        %516 = vmatpush.msra.mxu0 0.0
        %517 = vmatpush.msra.mxu0 %v496
        %518 = vmatpush.msra.mxu0 %v495
        %519 = vmatmul.f32.gmra.mxu0 %v498
        %v520 = vpop.f32.mrf.mxu0
        %v521 = vadd.f32 0.0, %v520
        %522 = vmatmul.f32.gmra.mxu0 %v501
        %v523 = vpop.f32.mrf.mxu0
        %v524 = vadd.f32 0.0, %v523
        %525 = vdwg.mxu0
        %v526 = vld [vmem:[%s3] sm:$0xff]
        %v527 = vld [vmem:[%s3 + $0x8] sm:$0xff]
        %v528 = vsub.f32 %v302, %v521
        %v529 = vsub.f32 %v303, %v524
        %v530 = vld [vmem:[%s4] sm:$0xff]
        %v531 = vld [vmem:[%s4 + $0x8] sm:$0xff]
        %533 = vset.pattern.permute.xlu0 0
        %534 = vperm.xlu0 %533, %v530
        %v535 = vpop.permute.xlu0 %534
        %538 = vset.pattern.permute.xlu0 0
        %539 = vperm.xlu0 %538, %v531
        %v540 = vpop.permute.xlu0 %539
        %v543 = vsel %vm307, %v526, 0
        %v546 = vsel %vm307, %v527, 0
        %548 = vmatpush.msra.mxu0 0.0
        %549 = vmatpush.msra.mxu0 0.0
        %550 = vmatpush.msra.mxu0 0.0
        %551 = vmatpush.msra.mxu0 0.0
        %552 = vmatpush.msra.mxu0 0.0
        %553 = vmatpush.msra.mxu0 0.0
        %554 = vmatpush.msra.mxu0 0.0
        %555 = vmatpush.msra.mxu0 0.0
        %556 = vmatpush.msra.mxu0 0.0
        %557 = vmatpush.msra.mxu0 0.0
        %558 = vmatpush.msra.mxu0 0.0
        %559 = vmatpush.msra.mxu0 0.0
        %560 = vmatpush.msra.mxu0 0.0
        %561 = vmatpush.msra.mxu0 0.0
        %562 = vmatpush.msra.mxu0 %v529
        %563 = vmatpush.msra.mxu0 %v528
        %564 = vmatmul.f32.gmra.mxu0 %v543
        %v565 = vpop.f32.mrf.mxu0
        %v566 = vadd.f32 %v535, %v565
        %567 = vmatmul.f32.gmra.mxu0 %v546
        %v568 = vpop.f32.mrf.mxu0
        %v569 = vadd.f32 %v540, %v568
        %570 = vdwg.mxu0
        %571 = vst.msk [vmem:[%s272] sm:$0xff] %vm307, %v566
        %572 = vst.msk [vmem:[%s272 + $0x8] sm:$0xff] %vm307, %v569
        %v573 = vsel %vm307, %v566, 0.0
        %574 = vadd.xlane.f32.xlu0 %v573
        %v575 = vpop.xlane.xlu0 %574
        %v576 = vsel %vm307, %v569, 0.0
        %577 = vadd.xlane.f32.xlu0 %v576
        %v578 = vpop.xlane.xlu0 %577
        %vm579 = vcmask 7168
        %580 = vst.msk [vmem:[%s296] sm:$0xff] %vm579, %v575
        %581 = vst.msk [vmem:[%s296 + $0x8] sm:$0xff] %vm579, %v578
        %v582 = vmul.f32 %v566, %v566
        %v583 = vmul.f32 %v569, %v569
        %v584 = vsel %vm307, %v582, 0.0
        %585 = vadd.xlane.f32.xlu0 %v584
        %v586 = vpop.xlane.xlu0 %585
        %v587 = vsel %vm307, %v583, 0.0
        %588 = vadd.xlane.f32.xlu0 %v587
        %v589 = vpop.xlane.xlu0 %588
        %590 = vst.msk [vmem:[%s301] sm:$0xff] %vm579, %v586
        %591 = vst.msk [vmem:[%s301 + $0x8] sm:$0xff] %vm579, %v589
        %s592 = sand.u32 %s140, 1
        %s593 = scalar_lea.sflag [#allocation3], %s592
        %s594 = sand.u32 %s140, 1
        %s595 = smul.addr %s594, 16
        %s596 = scalar_lea.vmem [#allocation2], %s595
        %p597 = scmp.lt.s32.totalorder %s22, 1
        %s598 = scalar_select %p597, %s22, 1
        %s599 = smul.addr %s598, 2
        %s600 = smul.addr %s599, 8
        %s601 = scalar_lea.vmem %s6, %s600
        %p602 = scmp.lt.s32.totalorder %s22, 1
        %s603 = scalar_select %p602, %s22, 1
        %s604 = smul.addr %s603, 2
        %s605 = smul.addr %s604, 8
        %s606 = scalar_lea.vmem %s7, %s605
        // Predicated region
        $region41: #{tpu_custom_call.1} parent=39 // pred_check
          %p607 = pneg %p150
        $region42: #{tpu_custom_call.1} parent=39 // pred_check_branch
          %609 = sbr.rel (%p607) target = $region44
        $region43: #{tpu_custom_call.1} parent=39 // pred_region
          %611 = vsyncadd %s593, 0
          %s612 = smul.addr %s22, 2
          %s613 = smul.addr %s612, 8
          %s614 = scalar_lea.hbm %s5, %s613
          %s615 = sshll.u32 %s596, 4
          %s616 = int_to_ptr.vmem [resolvable:$true] %s615
          %s617 = sshll.u32 %s614, 4
          %s618 = int_to_ptr.hbm [resolvable:$true] %s617
          %623 = dma.vmem_to_hbm [thread:$0]  %s616, 256, %s618, %s593, 128, 128, 8
        $region44: #{tpu_custom_call.1} parent=39 // pred_fallthru
          _
        // Predicated region
        $region45: #{tpu_custom_call.1} parent=39 // pred_check
          %p624 = pneg %p176
        $region46: #{tpu_custom_call.1} parent=39 // pred_check_branch
          %626 = sbr.rel (%p624) target = $region48
        $region47: #{tpu_custom_call.1} parent=39 // pred_region
          _
        $region48: #{tpu_custom_call.1} parent=39 // pred_fallthru
          _
        // Predicated region
        $region49: #{tpu_custom_call.1} parent=39 // pred_check
          %p627 = pneg %p202
        $region50: #{tpu_custom_call.1} parent=39 // pred_check_branch
          %629 = sbr.rel (%p627) target = $region52
        $region51: #{tpu_custom_call.1} parent=39 // pred_region
          _
        $region52: #{tpu_custom_call.1} parent=39 // pred_fallthru
          _
      $region40: #{tpu_custom_call.1} parent=5 // pred_fallthru
        _
      %p630 = scmp.le.s32.totalorder 2, %s17
      // Predicated region
      $region53: #{tpu_custom_call.1} parent=5 // pred_check
        %p631 = pneg %p630
      $region54: #{tpu_custom_call.1} parent=5 // pred_check_branch
        %633 = sbr.rel (%p631) target = $region56
      $region55: #{tpu_custom_call.1} parent=5 // pred_region
        %s634 = ssub.s32 %s17, 2
        // Predicated region
        $region57: #{tpu_custom_call.1} parent=55 // pred_check
          %p635 = pneg %p156
        $region58: #{tpu_custom_call.1} parent=55 // pred_check_branch
          %637 = sbr.rel (%p635) target = $region60
        $region59: #{tpu_custom_call.1} parent=55 // pred_region
          %s638 = sand.u32 %s141, 1
          %s639 = scalar_lea.sflag [#allocation3], %s638
          %s640 = sand.u32 %s141, 1
          %s641 = smul.addr %s640, 16
          %s642 = scalar_lea.vmem [#allocation2], %s641
          %644 = dma.done %s639, 256
        $region60: #{tpu_custom_call.1} parent=55 // pred_fallthru
          _
        // Predicated region
        $region61: #{tpu_custom_call.1} parent=55 // pred_check
          %p645 = pneg %p182
        $region62: #{tpu_custom_call.1} parent=55 // pred_check_branch
          %647 = sbr.rel (%p645) target = $region64
        $region63: #{tpu_custom_call.1} parent=55 // pred_region
          %p648 = scmp.lt.s32.totalorder %s23, 1
          %s649 = scalar_select %p648, %s23, 1
          %s650 = smul.addr %s649, 2
          %s651 = smul.addr %s650, 8
          %s652 = scalar_lea.vmem %s6, %s651
        $region64: #{tpu_custom_call.1} parent=55 // pred_fallthru
          _
        // Predicated region
        $region65: #{tpu_custom_call.1} parent=55 // pred_check
          %p653 = pneg %p208
        $region66: #{tpu_custom_call.1} parent=55 // pred_check_branch
          %655 = sbr.rel (%p653) target = $region68
        $region67: #{tpu_custom_call.1} parent=55 // pred_region
          %p656 = scmp.lt.s32.totalorder %s23, 1
          %s657 = scalar_select %p656, %s23, 1
          %s658 = smul.addr %s657, 2
          %s659 = smul.addr %s658, 8
          %s660 = scalar_lea.vmem %s7, %s659
        $region68: #{tpu_custom_call.1} parent=55 // pred_fallthru
          _
      $region56: #{tpu_custom_call.1} parent=5 // pred_fallthru
        _
    $region6: #{tpu_custom_call.1} parent=1 // loop_footer
      %s21 = sadd.s32 1, %s17
    $region7: #{tpu_custom_call.1} parent=1 // loop_footer_branch
      %16 = sbr.rel target = $region3
    $region8: #{tpu_custom_call.1} parent=1 // loop_exit
      _
    %661 = vsyncpa [#allocation3], 1
    %s662 = scalar_lea.sflag [#allocation3], 1
    %663 = vsyncpa %s662, 1

</llo_original>
